<compile_context>
chip_gen: v7x
topology: tpu7x:2x2x1
jax: 0.10.0
libtpu: 0.0.40
codegen_flags: <defaults>
</compile_context>

<pallas_src>
import jax
import jax.numpy as jnp
from jax.experimental import pallas as pl
from jax.experimental.pallas import tpu as pltpu


def _fused_double_q_kernel(a_ref, s_ref,
                           w1a_ref, w1s_ref, b1_ref,
                           w2_ref, b2_ref,
                           w3t_ref, b3t_ref,
                           out_ref):
    """min(Q1(x), Q2(x)) for one batch tile, fused as a single 3-matmul MLP."""
    cdt = a_ref.dtype  # compute dtype chosen by the wrapper (f32 or bf16)

    # Layer 1: h1 = relu([a | s] @ W1 + b1)  -> (tile, 2H), f32 accumulation.
    h1 = (jnp.dot(a_ref[...], w1a_ref[...], preferred_element_type=jnp.float32)
          + jnp.dot(s_ref[...], w1s_ref[...], preferred_element_type=jnp.float32)
          + b1_ref[...])
    h1 = jnp.maximum(h1, 0.0).astype(cdt)

    # Layer 2: block-diagonal W2 keeps the two heads independent -> (tile, 2H).
    h2 = jnp.dot(h1, w2_ref[...], preferred_element_type=jnp.float32) + b2_ref[...]
    h2 = jnp.maximum(h2, 0.0).astype(cdt)

    # Layer 3, transposed (batch on lanes): q_t[r, b] = sum_k W3t[r, k] * h2[b, k]
    # -> (2, tile).  dot_general contracts both operands on their last dim, so no
    # materialized transpose is needed.
    q_t = jax.lax.dot_general(
        w3t_ref[...], h2, (((1,), (1,)), ((), ())),
        preferred_element_type=jnp.float32) + b3t_ref[...]

    # Double-Q min over the 2 rows; lane-dense (1, 1, tile) store.
    out_ref[...] = jnp.minimum(q_t[0:1, :], q_t[1:2, :])[None].astype(out_ref.dtype)


def _pack_params(params, action_dim, compute_dtype):
    """Pack the two Q MLPs into one fused parameter set (cheap; done per call)."""
    p1, p2 = params["q1"], params["q2"]
    H = p1["w1"].shape[1]
    A = action_dim
    w1a = jnp.concatenate([p1["w1"][:A], p2["w1"][:A]], axis=1)       # (A, 2H)
    w1s = jnp.concatenate([p1["w1"][A:], p2["w1"][A:]], axis=1)       # (S, 2H)
    b1 = jnp.concatenate([p1["b1"], p2["b1"]], axis=1)                # (1, 2H)
    w2 = jnp.zeros((2 * H, 2 * H), jnp.float32)
    w2 = w2.at[:H, :H].set(p1["w2"]).at[H:, H:].set(p2["w2"])         # (2H, 2H)
    b2 = jnp.concatenate([p1["b2"], p2["b2"]], axis=1)                # (1, 2H)
    w3t = jnp.zeros((2, 2 * H), jnp.float32)
    w3t = w3t.at[0, :H].set(p1["w3"][:, 0]).at[1, H:].set(p2["w3"][:, 0])  # (2, 2H)
    b3t = jnp.concatenate([p1["b3"], p2["b3"]], axis=0)               # (2, 1)
    cdt = compute_dtype
    # matmul operands in compute dtype; biases stay f32 (f32 accumulation).
    return (w1a.astype(cdt), w1s.astype(cdt), b1,
            w2.astype(cdt), b2, w3t.astype(cdt), b3t)


def gp_critic_forward(action, state, params, *, batch_tile=256,
                      compute_dtype=jnp.float32):
    """Pallas wrapper: fused double-Q MLP + elementwise min. Returns (B, 1) f32."""
    B, A = action.shape
    S = state.shape[1]
    w1a, w1s, b1, w2, b2, w3t, b3t = _pack_params(params, A, compute_dtype)

    a = action.astype(compute_dtype)
    s = state.astype(compute_dtype)

    if B <= batch_tile:
        tile, nt = B, 1                      # whole batch in one grid step
    else:
        tile = batch_tile
        assert tile % 8 == 0, "batch_tile must be a multiple of 8 (use >=128)"
        nt = pl.cdiv(B, tile)
        pad = nt * tile - B
        if pad:                              # ragged batch: zero-pad, slice later
            a = jnp.pad(a, ((0, pad), (0, 0)))
            s = jnp.pad(s, ((0, pad), (0, 0)))

    def whole(arr):
        # weights / biases: same full block for every grid step (kept resident)
        return pl.BlockSpec(arr.shape, lambda i: (0, 0))

    out = pl.pallas_call(
        _fused_double_q_kernel,
        out_shape=jax.ShapeDtypeStruct((nt, 1, tile), jnp.float32),
        grid_spec=pltpu.PrefetchScalarGridSpec(
            num_scalar_prefetch=0,
            grid=(nt,),
            in_specs=[
                pl.BlockSpec((tile, A), lambda i: (i, 0)),
                pl.BlockSpec((tile, S), lambda i: (i, 0)),
                whole(w1a), whole(w1s), whole(b1),
                whole(w2), whole(b2), whole(w3t), whole(b3t),
            ],
            out_specs=pl.BlockSpec((1, 1, tile), lambda i: (i, 0, 0)),
        ),
        compiler_params=pltpu.CompilerParams(
            dimension_semantics=("parallel",)),
    )(a, s, w1a, w1s, b1, w2, b2, w3t, b3t)

    # (nt, 1, tile) flattened row-major == batch order; drop padding, match
    # the PyTorch (B, 1) output shape.
    return out.reshape(nt * tile)[:B].reshape(B, 1)


def init_params(key, in_dim, hidden_dim):
    """Deterministic synthetic parameters for the two Q MLPs."""
    def init_mlp(k):
        ks = jax.random.split(k, 6)
        s1 = 1.0 / jnp.sqrt(in_dim)
        s2 = 1.0 / jnp.sqrt(hidden_dim)
        return {
            "w1": jax.random.uniform(ks[0], (in_dim, hidden_dim), jnp.float32, -s1, s1),
            "b1": jax.random.uniform(ks[1], (1, hidden_dim), jnp.float32, -s1, s1),
            "w2": jax.random.uniform(ks[2], (hidden_dim, hidden_dim), jnp.float32, -s2, s2),
            "b2": jax.random.uniform(ks[3], (1, hidden_dim), jnp.float32, -s2, s2),
            "w3": jax.random.uniform(ks[4], (hidden_dim, 1), jnp.float32, -s2, s2),
            "b3": jax.random.uniform(ks[5], (1, 1), jnp.float32, -s2, s2),
        }
    k1, k2 = jax.random.split(key)
    return {"q1": init_mlp(k1), "q2": init_mlp(k2)}


def _reference(action, state, params):
    x = jnp.concatenate([action, state], axis=-1)
    def mlp(p):
        h = jnp.maximum(x @ p["w1"] + p["b1"], 0.0)
        h = jnp.maximum(h @ p["w2"] + p["b2"], 0.0)
        return h @ p["w3"] + p["b3"]
    return jnp.minimum(mlp(params["q1"]), mlp(params["q2"]))


if __name__ == "__main__":
    key = jax.random.PRNGKey(0)
    k_a, k_s, k_p, k_a2, k_s2 = jax.random.split(key, 5)

    A_DIM, S_DIM, HIDDEN = 6, 10, 32
    params = init_params(k_p, A_DIM + S_DIM, HIDDEN)

    fwd = jax.jit(gp_critic_forward,
                  static_argnames=("batch_tile", "compute_dtype"))

    # Small batch: single tile (grid=(1,)), f32 compute, tight tolerance.
    B1 = 16
    action = jax.random.normal(k_a, (B1, A_DIM), jnp.float32)
    state = jax.random.normal(k_s, (B1, S_DIM), jnp.float32)
    q = jax.block_until_ready(fwd(action, state, params))
    ref = _reference(action, state, params)
    assert q.shape == (B1, 1)
    assert jnp.allclose(q, ref, atol=1e-5, rtol=1e-5)

    # Ragged larger batch: 3 parallel 128-row tiles (padding path exercised),
    # bf16 compute with f32 accumulation (v6e / v7x recommendation).
    B2 = 300
    action2 = jax.random.normal(k_a2, (B2, A_DIM), jnp.float32)
    state2 = jax.random.normal(k_s2, (B2, S_DIM), jnp.float32)
    q2 = jax.block_until_ready(
        fwd(action2, state2, params, batch_tile=128,
            compute_dtype=jnp.bfloat16))
    ref2 = _reference(action2, state2, params)
    assert q2.shape == (B2, 1)
    assert jnp.allclose(q2, ref2, atol=5e-2, rtol=5e-2)

    print("KERNEL_OK")
</pallas_src>

<mosaic_0001>
module attributes {stable_mosaic.version = 11 : i64} {
  func.func @_fused_double_q_kernel(%arg0: i32, %arg1: memref<16x6xf32, #tpu.memory_space<vmem>>, %arg2: memref<16x10xf32, #tpu.memory_space<vmem>>, %arg3: memref<6x64xf32, #tpu.memory_space<vmem>>, %arg4: memref<10x64xf32, #tpu.memory_space<vmem>>, %arg5: memref<1x64xf32, #tpu.memory_space<vmem>>, %arg6: memref<64x64xf32, #tpu.memory_space<vmem>>, %arg7: memref<1x64xf32, #tpu.memory_space<vmem>>, %arg8: memref<2x64xf32, #tpu.memory_space<vmem>>, %arg9: memref<2x1xf32, #tpu.memory_space<vmem>>, %arg10: memref<1x1x16xf32, #tpu.memory_space<vmem>>) attributes {dimension_semantics = [#tpu.dimension_semantics<parallel>], iteration_bounds = array<i64: 1>, scalar_prefetch = 0 : i64, scratch_operands = 0 : i64, tpu.core_type = #tpu.core_type<tc>, window_params = [{transform_indices = @transform_0, window_bounds = array<i64: 16, 6>}, {transform_indices = @transform_1, window_bounds = array<i64: 16, 10>}, {pipeline_mode = #tpu.pipeline_mode<synchronous>, transform_indices = @transform_2, window_bounds = array<i64: 6, 64>}, {pipeline_mode = #tpu.pipeline_mode<synchronous>, transform_indices = @transform_3, window_bounds = array<i64: 10, 64>}, {pipeline_mode = #tpu.pipeline_mode<synchronous>, transform_indices = @transform_4, window_bounds = array<i64: 1, 64>}, {pipeline_mode = #tpu.pipeline_mode<synchronous>, transform_indices = @transform_5, window_bounds = array<i64: 64, 64>}, {pipeline_mode = #tpu.pipeline_mode<synchronous>, transform_indices = @transform_6, window_bounds = array<i64: 1, 64>}, {pipeline_mode = #tpu.pipeline_mode<synchronous>, transform_indices = @transform_7, window_bounds = array<i64: 2, 64>}, {pipeline_mode = #tpu.pipeline_mode<synchronous>, transform_indices = @transform_8, window_bounds = array<i64: 2, 1>}, {transform_indices = @transform_9, window_bounds = array<i64: 1, 1, 16>}]} {
    %c0 = arith.constant 0 : index
    %c0_0 = arith.constant 0 : index
    %0 = vector.load %arg1[%c0, %c0_0] : memref<16x6xf32, #tpu.memory_space<vmem>>, vector<16x6xf32>
    %c0_1 = arith.constant 0 : index
    %c0_2 = arith.constant 0 : index
    %1 = vector.load %arg3[%c0_1, %c0_2] : memref<6x64xf32, #tpu.memory_space<vmem>>, vector<6x64xf32>
    %cst = arith.constant dense<0.000000e+00> : vector<16x64xf32>
    %2 = tpu.matmul %0, %1, %cst {dimension_numbers = #tpu.dot_dimension_numbers<[1], [0], [0], [1], [0, 0, 1, 1], [], []>} : vector<16x6xf32>, vector<6x64xf32>, vector<16x64xf32> -> vector<16x64xf32>
    %c0_3 = arith.constant 0 : index
    %c0_4 = arith.constant 0 : index
    %3 = vector.load %arg2[%c0_3, %c0_4] : memref<16x10xf32, #tpu.memory_space<vmem>>, vector<16x10xf32>
    %c0_5 = arith.constant 0 : index
    %c0_6 = arith.constant 0 : index
    %4 = vector.load %arg4[%c0_5, %c0_6] : memref<10x64xf32, #tpu.memory_space<vmem>>, vector<10x64xf32>
    %cst_7 = arith.constant dense<0.000000e+00> : vector<16x64xf32>
    %5 = tpu.matmul %3, %4, %cst_7 {dimension_numbers = #tpu.dot_dimension_numbers<[1], [0], [0], [1], [0, 0, 1, 1], [], []>} : vector<16x10xf32>, vector<10x64xf32>, vector<16x64xf32> -> vector<16x64xf32>
    %6 = arith.addf %2, %5 : vector<16x64xf32>
    %c0_8 = arith.constant 0 : index
    %c0_9 = arith.constant 0 : index
    %7 = vector.load %arg5[%c0_8, %c0_9] : memref<1x64xf32, #tpu.memory_space<vmem>>, vector<1x64xf32>
    %8 = vector.broadcast %7 : vector<1x64xf32> to vector<16x64xf32>
    %9 = arith.addf %6, %8 : vector<16x64xf32>
    %cst_10 = arith.constant 0.000000e+00 : f32
    %10 = vector.broadcast %cst_10 : f32 to vector<16x64xf32>
    %11 = arith.maximumf %9, %10 : vector<16x64xf32>
    %c0_11 = arith.constant 0 : index
    %c0_12 = arith.constant 0 : index
    %12 = vector.load %arg6[%c0_11, %c0_12] : memref<64x64xf32, #tpu.memory_space<vmem>>, vector<64x64xf32>
    %cst_13 = arith.constant dense<0.000000e+00> : vector<16x64xf32>
    %13 = tpu.matmul %11, %12, %cst_13 {dimension_numbers = #tpu.dot_dimension_numbers<[1], [0], [0], [1], [0, 0, 1, 1], [], []>} : vector<16x64xf32>, vector<64x64xf32>, vector<16x64xf32> -> vector<16x64xf32>
    %c0_14 = arith.constant 0 : index
    %c0_15 = arith.constant 0 : index
    %14 = vector.load %arg7[%c0_14, %c0_15] : memref<1x64xf32, #tpu.memory_space<vmem>>, vector<1x64xf32>
    %15 = vector.broadcast %14 : vector<1x64xf32> to vector<16x64xf32>
    %16 = arith.addf %13, %15 : vector<16x64xf32>
    %cst_16 = arith.constant 0.000000e+00 : f32
    %17 = vector.broadcast %cst_16 : f32 to vector<16x64xf32>
    %18 = arith.maximumf %16, %17 : vector<16x64xf32>
    %c0_17 = arith.constant 0 : index
    %c0_18 = arith.constant 0 : index
    %19 = vector.load %arg8[%c0_17, %c0_18] : memref<2x64xf32, #tpu.memory_space<vmem>>, vector<2x64xf32>
    %cst_19 = arith.constant dense<0.000000e+00> : vector<2x16xf32>
    %20 = tpu.matmul %19, %18, %cst_19 {dimension_numbers = #tpu.dot_dimension_numbers<[1], [1], [0], [0], [0, 0, 1, 0], [], []>} : vector<2x64xf32>, vector<16x64xf32>, vector<2x16xf32> -> vector<2x16xf32>
    %c0_20 = arith.constant 0 : index
    %c0_21 = arith.constant 0 : index
    %21 = vector.load %arg9[%c0_20, %c0_21] : memref<2x1xf32, #tpu.memory_space<vmem>>, vector<2x1xf32>
    %22 = vector.broadcast %21 : vector<2x1xf32> to vector<2x16xf32>
    %23 = arith.addf %20, %22 : vector<2x16xf32>
    %24 = vector.extract_strided_slice %23 {offsets = [0, 0], sizes = [1, 16], strides = [1, 1]} : vector<2x16xf32> to vector<1x16xf32>
    %25 = vector.extract_strided_slice %23 {offsets = [1, 0], sizes = [1, 16], strides = [1, 1]} : vector<2x16xf32> to vector<1x16xf32>
    %26 = arith.minimumf %24, %25 : vector<1x16xf32>
    %27 = vector.shape_cast %26 : vector<1x16xf32> to vector<1x1x16xf32>
    %c0_22 = arith.constant 0 : index
    %c0_23 = arith.constant 0 : index
    %c0_24 = arith.constant 0 : index
    %28 = vector.load %arg10[%c0_22, %c0_23, %c0_24] : memref<1x1x16xf32, #tpu.memory_space<vmem>>, vector<1x1x16xf32>
    tpu.vector_store %arg10[%c0_22, %c0_23, %c0_24], %27 {strides = array<i32>} : memref<1x1x16xf32, #tpu.memory_space<vmem>>, vector<1x1x16xf32>,
    return
  }
  func.func @transform_0(%arg0: i32) -> (i32, i32) {
    %c0_i32 = arith.constant 0 : i32
    %c0_i32_0 = arith.constant 0 : i32
    return %arg0, %c0_i32 : i32, i32
  }
  func.func @transform_1(%arg0: i32) -> (i32, i32) {
    %c0_i32 = arith.constant 0 : i32
    %c0_i32_0 = arith.constant 0 : i32
    return %arg0, %c0_i32 : i32, i32
  }
  func.func @transform_2(%arg0: i32) -> (i32, i32) {
    %c0_i32 = arith.constant 0 : i32
    %c0_i32_0 = arith.constant 0 : i32
    %c0_i32_1 = arith.constant 0 : i32
    return %c0_i32, %c0_i32_0 : i32, i32
  }
  func.func @transform_3(%arg0: i32) -> (i32, i32) {
    %c0_i32 = arith.constant 0 : i32
    %c0_i32_0 = arith.constant 0 : i32
    %c0_i32_1 = arith.constant 0 : i32
    return %c0_i32, %c0_i32_0 : i32, i32
  }
  func.func @transform_4(%arg0: i32) -> (i32, i32) {
    %c0_i32 = arith.constant 0 : i32
    %c0_i32_0 = arith.constant 0 : i32
    %c0_i32_1 = arith.constant 0 : i32
    return %c0_i32, %c0_i32_0 : i32, i32
  }
  func.func @transform_5(%arg0: i32) -> (i32, i32) {
    %c0_i32 = arith.constant 0 : i32
    %c0_i32_0 = arith.constant 0 : i32
    %c0_i32_1 = arith.constant 0 : i32
    return %c0_i32, %c0_i32_0 : i32, i32
  }
  func.func @transform_6(%arg0: i32) -> (i32, i32) {
    %c0_i32 = arith.constant 0 : i32
    %c0_i32_0 = arith.constant 0 : i32
    %c0_i32_1 = arith.constant 0 : i32
    return %c0_i32, %c0_i32_0 : i32, i32
  }
  func.func @transform_7(%arg0: i32) -> (i32, i32) {
    %c0_i32 = arith.constant 0 : i32
    %c0_i32_0 = arith.constant 0 : i32
    %c0_i32_1 = arith.constant 0 : i32
    return %c0_i32, %c0_i32_0 : i32, i32
  }
  func.func @transform_8(%arg0: i32) -> (i32, i32) {
    %c0_i32 = arith.constant 0 : i32
    %c0_i32_0 = arith.constant 0 : i32
    %c0_i32_1 = arith.constant 0 : i32
    return %c0_i32, %c0_i32_0 : i32, i32
  }
  func.func @transform_9(%arg0: i32) -> (i32, i32, i32) {
    %c0_i32 = arith.constant 0 : i32
    %c0_i32_0 = arith.constant 0 : i32
    %c0_i32_1 = arith.constant 0 : i32
    return %arg0, %c0_i32, %c0_i32_0 : i32, i32, i32
  }
}

</mosaic_0001>

<llo_original>
// kernel: gp_critic_forward.1
$region0: #{gp_critic_forward.1}
  #allocation0 [shape = 'u32[]', space=smem, size = 0x4, offset = 0x4, fixed_abs, tag = 'smem constant byte address 0x4 - core index']
  #allocation1 [shape = 'u32[144,128]{1,0:T(1,128)}', space=vmem, size = 0x12000, scoped, tag = 'internal scratch']
  %s0 = inlined_call_operand.vmem [shape: f32[16,6], index: 0, kind: input, shape index: {}]
  %s1 = inlined_call_operand.vmem [shape: f32[16,10], index: 1, kind: input, shape index: {}]
  %s2 = inlined_call_operand.vmem [shape: f32[6,64], index: 2, kind: input, shape index: {}]
  %s3 = inlined_call_operand.vmem [shape: f32[10,64], index: 3, kind: input, shape index: {}]
  %s4 = inlined_call_operand.vmem [shape: f32[1,64], index: 4, kind: input, shape index: {}]
  %s5 = inlined_call_operand.vmem [shape: f32[64,64], index: 5, kind: input, shape index: {}]
  %s6 = inlined_call_operand.vmem [shape: f32[1,64], index: 6, kind: input, shape index: {}]
  %s7 = inlined_call_operand.vmem [shape: f32[2,64], index: 7, kind: input, shape index: {}]
  %s8 = inlined_call_operand.vmem [shape: f32[2,1], index: 8, kind: input, shape index: {}]
  %s9 = inlined_call_operand.hbm [shape: f32[1,1,16], index: 9, kind: output, shape index: {}]
  %s10 = sld [smem:[#allocation0]]
  $region46: #{gp_critic_forward.1} parent=0
    _
  %s12 = ssub.s32 1, %s10
  %s13 = scalar_select 0, %s12, %s10
  $region1: #{gp_critic_forward.1} parent=0
    #allocation2 [shape = 'u8[512]{0}', space=vmem, size = 0x400, scoped, tag = 'output window, operand 0, single buffered']
    #allocation3 [shape = 's32[1]{0}', space=sflag, size = 0x4, scoped, tag = 'scoped memory for gp_critic_forward.1']
    %14 = vsyncpa [#allocation3], 0
    // Predicated region
    $region2: #{gp_critic_forward.1} parent=1 // pred_check
      _
    $region3: #{gp_critic_forward.1} parent=1 // pred_check_branch
      %16 = sbr.rel (0) target = $region5
    $region4: #{gp_critic_forward.1} parent=1 // pred_region
      _
    $region5: #{gp_critic_forward.1} parent=1 // pred_fallthru
      _
    // Predicated region
    $region6: #{gp_critic_forward.1} parent=1 // pred_check
      _
    $region7: #{gp_critic_forward.1} parent=1 // pred_check_branch
      %18 = sbr.rel (0) target = $region9
    $region8: #{gp_critic_forward.1} parent=1 // pred_region
      _
    $region9: #{gp_critic_forward.1} parent=1 // pred_fallthru
      _
    // Predicated region
    $region10: #{gp_critic_forward.1} parent=1 // pred_check
      _
    $region11: #{gp_critic_forward.1} parent=1 // pred_check_branch
      %20 = sbr.rel (0) target = $region13
    $region12: #{gp_critic_forward.1} parent=1 // pred_region
      _
    $region13: #{gp_critic_forward.1} parent=1 // pred_fallthru
      _
    // Predicated region
    $region14: #{gp_critic_forward.1} parent=1 // pred_check
      _
    $region15: #{gp_critic_forward.1} parent=1 // pred_check_branch
      %22 = sbr.rel (0) target = $region17
    $region16: #{gp_critic_forward.1} parent=1 // pred_region
      _
    $region17: #{gp_critic_forward.1} parent=1 // pred_fallthru
      _
    // Predicated region
    $region18: #{gp_critic_forward.1} parent=1 // pred_check
      _
    $region19: #{gp_critic_forward.1} parent=1 // pred_check_branch
      %24 = sbr.rel (0) target = $region21
    $region20: #{gp_critic_forward.1} parent=1 // pred_region
      _
    $region21: #{gp_critic_forward.1} parent=1 // pred_fallthru
      _
    // Predicated region
    $region22: #{gp_critic_forward.1} parent=1 // pred_check
      _
    $region23: #{gp_critic_forward.1} parent=1 // pred_check_branch
      %26 = sbr.rel (0) target = $region25
    $region24: #{gp_critic_forward.1} parent=1 // pred_region
      _
    $region25: #{gp_critic_forward.1} parent=1 // pred_fallthru
      _
    // Predicated region
    $region26: #{gp_critic_forward.1} parent=1 // pred_check
      _
    $region27: #{gp_critic_forward.1} parent=1 // pred_check_branch
      %28 = sbr.rel (0) target = $region29
    $region28: #{gp_critic_forward.1} parent=1 // pred_region
      _
    $region29: #{gp_critic_forward.1} parent=1 // pred_fallthru
      _
    // Predicated region
    $region30: #{gp_critic_forward.1} parent=1 // pred_check
      _
    $region31: #{gp_critic_forward.1} parent=1 // pred_check_branch
      %30 = sbr.rel (0) target = $region33
    $region32: #{gp_critic_forward.1} parent=1 // pred_region
      _
    $region33: #{gp_critic_forward.1} parent=1 // pred_fallthru
      _
    // Predicated region
    $region34: #{gp_critic_forward.1} parent=1 // pred_check
      _
    $region35: #{gp_critic_forward.1} parent=1 // pred_check_branch
      %32 = sbr.rel (0) target = $region37
    $region36: #{gp_critic_forward.1} parent=1 // pred_region
      _
    $region37: #{gp_critic_forward.1} parent=1 // pred_fallthru
      _
    %v33 = vld [vmem:[%s0] sm:$0xff]
    %v34 = vld [vmem:[%s0 + $0x8] sm:$0xff]
    %v35 = vld [vmem:[%s2] sm:$0x3f]
    %v36 = vld [vmem:[%s1] sm:$0xff]
    %v37 = vld [vmem:[%s1 + $0x8] sm:$0xff]
    %v38 = vld [vmem:[%s3] sm:$0xff]
    %v39 = vld [vmem:[%s3 + $0x8] sm:$0x3]
    %vm40 = vcmask 80896
    %v42 = vsel %vm40, %v36, 0
    %v45 = vsel %vm40, %v37, 0
    %vm47 = vcmask 1041408
    %v49 = vsel %vm47, %v39, 0
    %51 = vmatprep.subr.mxu0 0.0
    %52 = vmatpush1.msra.mxu0 %v38
    %53 = vmatprep.subr.mxu0 0.0
    %54 = vmatpush1.msra.mxu0 %v49
    %55 = vmatprep.subr.mxu0 0.0
    %56 = vmatpush1.msra.mxu0 0.0
    %57 = vmatprep.subr.mxu0 0.0
    %58 = vmatpush1.msra.mxu0 0.0
    %59 = vmatprep.subr.mxu0 0.0
    %60 = vmatpush1.msra.mxu0 0.0
    %61 = vmatprep.subr.mxu0 0.0
    %62 = vmatpush1.msra.mxu0 0.0
    %63 = vmatprep.subr.mxu0 0.0
    %64 = vmatpush1.msra.mxu0 0.0
    %65 = vmatprep.subr.mxu0 0.0
    %66 = vmatpush1.msra.mxu0 0.0
    %67 = vmatprep.subr.mxu0 0.0
    %68 = vmatpush1.msra.mxu0 0.0
    %69 = vmatprep.subr.mxu0 0.0
    %70 = vmatpush1.msra.mxu0 0.0
    %71 = vmatprep.subr.mxu0 0.0
    %72 = vmatpush1.msra.mxu0 0.0
    %73 = vmatprep.subr.mxu0 0.0
    %74 = vmatpush1.msra.mxu0 0.0
    %75 = vmatprep.subr.mxu0 0.0
    %76 = vmatpush1.msra.mxu0 0.0
    %77 = vmatprep.subr.mxu0 0.0
    %78 = vmatpush1.msra.mxu0 0.0
    %79 = vmatprep.subr.mxu0 0.0
    %80 = vmatpush1.msra.mxu0 0.0
    %81 = vmatprep.subr.mxu0 0.0
    %82 = vmatpush1.msra.mxu0 0.0
    %83 = vmatprep.subr.mxu0 0.0
    %84 = vmatpush1.msra.mxu0 0.0
    %85 = vmatprep.subr.mxu0 0.0
    %86 = vmatpush1.msra.mxu0 0.0
    %87 = vmatprep.subr.mxu0 0.0
    %88 = vmatpush1.msra.mxu0 0.0
    %89 = vmatprep.subr.mxu0 0.0
    %90 = vmatpush1.msra.mxu0 0.0
    %91 = vmatprep.subr.mxu0 0.0
    %92 = vmatpush1.msra.mxu0 0.0
    %93 = vmatprep.subr.mxu0 0.0
    %94 = vmatpush1.msra.mxu0 0.0
    %95 = vmatprep.subr.mxu0 0.0
    %96 = vmatpush1.msra.mxu0 0.0
    %97 = vmatprep.subr.mxu0 0.0
    %98 = vmatpush1.msra.mxu0 0.0
    %99 = vmatprep.subr.mxu0 0.0
    %100 = vmatpush1.msra.mxu0 0.0
    %101 = vmatprep.subr.mxu0 0.0
    %102 = vmatpush1.msra.mxu0 0.0
    %103 = vmatprep.subr.mxu0 0.0
    %104 = vmatpush1.msra.mxu0 0.0
    %105 = vmatprep.subr.mxu0 0.0
    %106 = vmatpush1.msra.mxu0 0.0
    %107 = vmatprep.subr.mxu0 0.0
    %108 = vmatpush1.msra.mxu0 0.0
    %109 = vmatprep.subr.mxu0 0.0
    %110 = vmatpush1.msra.mxu0 0.0
    %111 = vmatprep.subr.mxu0 0.0
    %112 = vmatpush1.msra.mxu0 0.0
    %113 = vmatprep.subr.mxu0 0.0
    %114 = vmatpush1.msra.mxu0 0.0
    %115 = vmatprep.mubr.f32.mxu0 0.0
    %116 = vmatmul.mubr.f32.gmra.mrb[0].mxu0 %v42
    %v117 = vpop.f32.mrb[0].mxu0
    %v118 = vadd.f32 0.0, %v117
    %v119 = vpop.f32.mrb[0].mxu0
    %120 = vmatprep.mubr.f32.mxu0 0.0
    %121 = vmatmul.mubr.f32.gmra.mrb[0].mxu0 %v45
    %v122 = vpop.f32.mrb[0].mxu0
    %v123 = vadd.f32 0.0, %v122
    %v124 = vpop.f32.mrb[0].mxu0
    %125 = vdwg.mxu0
    %vm126 = vcmask 48128
    %v128 = vsel %vm126, %v33, 0
    %v131 = vsel %vm126, %v34, 0
    %vm133 = vcmask 1045504
    %v135 = vsel %vm133, %v35, 0
    %137 = vmatprep.subr.mxu0 0.0
    %138 = vmatpush1.msra.mxu0 %v135
    %139 = vmatprep.subr.mxu0 0.0
    %140 = vmatpush1.msra.mxu0 0.0
    %141 = vmatprep.subr.mxu0 0.0
    %142 = vmatpush1.msra.mxu0 0.0
    %143 = vmatprep.subr.mxu0 0.0
    %144 = vmatpush1.msra.mxu0 0.0
    %145 = vmatprep.subr.mxu0 0.0
    %146 = vmatpush1.msra.mxu0 0.0
    %147 = vmatprep.subr.mxu0 0.0
    %148 = vmatpush1.msra.mxu0 0.0
    %149 = vmatprep.subr.mxu0 0.0
    %150 = vmatpush1.msra.mxu0 0.0
    %151 = vmatprep.subr.mxu0 0.0
    %152 = vmatpush1.msra.mxu0 0.0
    %153 = vmatprep.subr.mxu0 0.0
    %154 = vmatpush1.msra.mxu0 0.0
    %155 = vmatprep.subr.mxu0 0.0
    %156 = vmatpush1.msra.mxu0 0.0
    %157 = vmatprep.subr.mxu0 0.0
    %158 = vmatpush1.msra.mxu0 0.0
    %159 = vmatprep.subr.mxu0 0.0
    %160 = vmatpush1.msra.mxu0 0.0
    %161 = vmatprep.subr.mxu0 0.0
    %162 = vmatpush1.msra.mxu0 0.0
    %163 = vmatprep.subr.mxu0 0.0
    %164 = vmatpush1.msra.mxu0 0.0
    %165 = vmatprep.subr.mxu0 0.0
    %166 = vmatpush1.msra.mxu0 0.0
    %167 = vmatprep.subr.mxu0 0.0
    %168 = vmatpush1.msra.mxu0 0.0
    %169 = vmatprep.subr.mxu0 0.0
    %170 = vmatpush1.msra.mxu0 0.0
    %171 = vmatprep.subr.mxu0 0.0
    %172 = vmatpush1.msra.mxu0 0.0
    %173 = vmatprep.subr.mxu0 0.0
    %174 = vmatpush1.msra.mxu0 0.0
    %175 = vmatprep.subr.mxu0 0.0
    %176 = vmatpush1.msra.mxu0 0.0
    %177 = vmatprep.subr.mxu0 0.0
    %178 = vmatpush1.msra.mxu0 0.0
    %179 = vmatprep.subr.mxu0 0.0
    %180 = vmatpush1.msra.mxu0 0.0
    %181 = vmatprep.subr.mxu0 0.0
    %182 = vmatpush1.msra.mxu0 0.0
    %183 = vmatprep.subr.mxu0 0.0
    %184 = vmatpush1.msra.mxu0 0.0
    %185 = vmatprep.subr.mxu0 0.0
    %186 = vmatpush1.msra.mxu0 0.0
    %187 = vmatprep.subr.mxu0 0.0
    %188 = vmatpush1.msra.mxu0 0.0
    %189 = vmatprep.subr.mxu0 0.0
    %190 = vmatpush1.msra.mxu0 0.0
    %191 = vmatprep.subr.mxu0 0.0
    %192 = vmatpush1.msra.mxu0 0.0
    %193 = vmatprep.subr.mxu0 0.0
    %194 = vmatpush1.msra.mxu0 0.0
    %195 = vmatprep.subr.mxu0 0.0
    %196 = vmatpush1.msra.mxu0 0.0
    %197 = vmatprep.subr.mxu0 0.0
    %198 = vmatpush1.msra.mxu0 0.0
    %199 = vmatprep.subr.mxu0 0.0
    %200 = vmatpush1.msra.mxu0 0.0
    %201 = vmatprep.mubr.f32.mxu0 0.0
    %202 = vmatmul.mubr.f32.gmra.mrb[0].mxu0 %v128
    %v203 = vpop.f32.mrb[0].mxu0
    %v204 = vadd.f32 %v118, %v203
    %v205 = vpop.f32.mrb[0].mxu0
    %206 = vmatprep.mubr.f32.mxu0 0.0
    %207 = vmatmul.mubr.f32.gmra.mrb[0].mxu0 %v131
    %v208 = vpop.f32.mrb[0].mxu0
    %v209 = vadd.f32 %v123, %v208
    %v210 = vpop.f32.mrb[0].mxu0
    %211 = vdwg.mxu0
    %v212 = vld [vmem:[%s4] sm:$0x1]
    %v214 = vlaneseq
    %v215 = vshrl.u32 %v214, 7
    %v216 = vsub.s32 0, %v215
    %v217 = vrot.slane %v212, %v216
    %v219 = vadd.f32 %v204, %v217
    %v220 = vadd.f32 %v209, %v217
    %v221 = vmax.f32 %v219, 0.0
    %v222 = vmax.f32 %v220, 0.0
    %v223 = vld [vmem:[%s5] sm:$0xff]
    %v224 = vld [vmem:[%s5 + $0x8] sm:$0xff]
    %v225 = vld [vmem:[%s5 + $0x10] sm:$0xff]
    %v226 = vld [vmem:[%s5 + $0x18] sm:$0xff]
    %v227 = vld [vmem:[%s5 + $0x20] sm:$0xff]
    %v228 = vld [vmem:[%s5 + $0x28] sm:$0xff]
    %v229 = vld [vmem:[%s5 + $0x30] sm:$0xff]
    %v230 = vld [vmem:[%s5 + $0x38] sm:$0xff]
    %v231 = vld [vmem:[%s6] sm:$0x1]
    %v233 = vlaneseq
    %v234 = vshrl.u32 %v233, 7
    %v235 = vsub.s32 0, %v234
    %v236 = vrot.slane %v231, %v235
    %vm238 = vcmask 523264
    %v240 = vsel %vm238, %v221, 0
    %v243 = vsel %vm238, %v222, 0
    %245 = vmatprep.subr.mxu0 0.0
    %246 = vmatpush1.msra.mxu0 %v223
    %247 = vmatprep.subr.mxu0 0.0
    %248 = vmatpush1.msra.mxu0 %v224
    %249 = vmatprep.subr.mxu0 0.0
    %250 = vmatpush1.msra.mxu0 %v225
    %251 = vmatprep.subr.mxu0 0.0
    %252 = vmatpush1.msra.mxu0 %v226
    %253 = vmatprep.subr.mxu0 0.0
    %254 = vmatpush1.msra.mxu0 %v227
    %255 = vmatprep.subr.mxu0 0.0
    %256 = vmatpush1.msra.mxu0 %v228
    %257 = vmatprep.subr.mxu0 0.0
    %258 = vmatpush1.msra.mxu0 %v229
    %259 = vmatprep.subr.mxu0 0.0
    %260 = vmatpush1.msra.mxu0 %v230
    %261 = vmatprep.subr.mxu0 0.0
    %262 = vmatpush1.msra.mxu0 0.0
    %263 = vmatprep.subr.mxu0 0.0
    %264 = vmatpush1.msra.mxu0 0.0
    %265 = vmatprep.subr.mxu0 0.0
    %266 = vmatpush1.msra.mxu0 0.0
    %267 = vmatprep.subr.mxu0 0.0
    %268 = vmatpush1.msra.mxu0 0.0
    %269 = vmatprep.subr.mxu0 0.0
    %270 = vmatpush1.msra.mxu0 0.0
    %271 = vmatprep.subr.mxu0 0.0
    %272 = vmatpush1.msra.mxu0 0.0
    %273 = vmatprep.subr.mxu0 0.0
    %274 = vmatpush1.msra.mxu0 0.0
    %275 = vmatprep.subr.mxu0 0.0
    %276 = vmatpush1.msra.mxu0 0.0
    %277 = vmatprep.subr.mxu0 0.0
    %278 = vmatpush1.msra.mxu0 0.0
    %279 = vmatprep.subr.mxu0 0.0
    %280 = vmatpush1.msra.mxu0 0.0
    %281 = vmatprep.subr.mxu0 0.0
    %282 = vmatpush1.msra.mxu0 0.0
    %283 = vmatprep.subr.mxu0 0.0
    %284 = vmatpush1.msra.mxu0 0.0
    %285 = vmatprep.subr.mxu0 0.0
    %286 = vmatpush1.msra.mxu0 0.0
    %287 = vmatprep.subr.mxu0 0.0
    %288 = vmatpush1.msra.mxu0 0.0
    %289 = vmatprep.subr.mxu0 0.0
    %290 = vmatpush1.msra.mxu0 0.0
    %291 = vmatprep.subr.mxu0 0.0
    %292 = vmatpush1.msra.mxu0 0.0
    %293 = vmatprep.subr.mxu0 0.0
    %294 = vmatpush1.msra.mxu0 0.0
    %295 = vmatprep.subr.mxu0 0.0
    %296 = vmatpush1.msra.mxu0 0.0
    %297 = vmatprep.subr.mxu0 0.0
    %298 = vmatpush1.msra.mxu0 0.0
    %299 = vmatprep.subr.mxu0 0.0
    %300 = vmatpush1.msra.mxu0 0.0
    %301 = vmatprep.subr.mxu0 0.0
    %302 = vmatpush1.msra.mxu0 0.0
    %303 = vmatprep.subr.mxu0 0.0
    %304 = vmatpush1.msra.mxu0 0.0
    %305 = vmatprep.subr.mxu0 0.0
    %306 = vmatpush1.msra.mxu0 0.0
    %307 = vmatprep.subr.mxu0 0.0
    %308 = vmatpush1.msra.mxu0 0.0
    %309 = vmatprep.mubr.f32.mxu0 0.0
    %310 = vmatmul.mubr.f32.gmra.mrb[0].mxu0 %v240
    %v311 = vpop.f32.mrb[0].mxu0
    %v312 = vadd.f32 %v236, %v311
    %v313 = vpop.f32.mrb[0].mxu0
    %314 = vmatprep.mubr.f32.mxu0 0.0
    %315 = vmatmul.mubr.f32.gmra.mrb[0].mxu0 %v243
    %v316 = vpop.f32.mrb[0].mxu0
    %v317 = vadd.f32 %v236, %v316
    %v318 = vpop.f32.mrb[0].mxu0
    %319 = vdwg.mxu0
    %v320 = vmax.f32 %v312, 0.0
    %v321 = vmax.f32 %v317, 0.0
    %v322 = vld [vmem:[%s7] sm:$0x3]
    %v323 = vld [vmem:[%s8] sm:$0x3]
    %325 = vset.pattern.permute.xlu0 0
    %326 = vperm.xlu0 %325, %v323
    %v327 = vpop.permute.xlu0 %326
    %v330 = vsel %vm238, %v322, 0
    %v333 = vsel %vm238, %v320, 0
    %v336 = vsel %vm238, %v321, 0
    %338 = vmatprep.subr.mxu0 0.0
    %339 = vmatpush1.xpose.msra.mxu0 %v333
    %340 = vmatprep.subr.mxu0 0.0
    %341 = vmatpush1.xpose.msra.mxu0 %v336
    %342 = vmatprep.subr.mxu0 0.0
    %343 = vmatpush1.xpose.msra.mxu0 0.0
    %344 = vmatprep.subr.mxu0 0.0
    %345 = vmatpush1.xpose.msra.mxu0 0.0
    %346 = vmatprep.subr.mxu0 0.0
    %347 = vmatpush1.xpose.msra.mxu0 0.0
    %348 = vmatprep.subr.mxu0 0.0
    %349 = vmatpush1.xpose.msra.mxu0 0.0
    %350 = vmatprep.subr.mxu0 0.0
    %351 = vmatpush1.xpose.msra.mxu0 0.0
    %352 = vmatprep.subr.mxu0 0.0
    %353 = vmatpush1.xpose.msra.mxu0 0.0
    %354 = vmatprep.subr.mxu0 0.0
    %355 = vmatpush1.xpose.msra.mxu0 0.0
    %356 = vmatprep.subr.mxu0 0.0
    %357 = vmatpush1.xpose.msra.mxu0 0.0
    %358 = vmatprep.subr.mxu0 0.0
    %359 = vmatpush1.xpose.msra.mxu0 0.0
    %360 = vmatprep.subr.mxu0 0.0
    %361 = vmatpush1.xpose.msra.mxu0 0.0
    %362 = vmatprep.subr.mxu0 0.0
    %363 = vmatpush1.xpose.msra.mxu0 0.0
    %364 = vmatprep.subr.mxu0 0.0
    %365 = vmatpush1.xpose.msra.mxu0 0.0
    %366 = vmatprep.subr.mxu0 0.0
    %367 = vmatpush1.xpose.msra.mxu0 0.0
    %368 = vmatprep.subr.mxu0 0.0
    %369 = vmatpush1.xpose.msra.mxu0 0.0
    %370 = vmatprep.subr.mxu0 0.0
    %371 = vmatpush1.xpose.msra.mxu0 0.0
    %372 = vmatprep.subr.mxu0 0.0
    %373 = vmatpush1.xpose.msra.mxu0 0.0
    %374 = vmatprep.subr.mxu0 0.0
    %375 = vmatpush1.xpose.msra.mxu0 0.0
    %376 = vmatprep.subr.mxu0 0.0
    %377 = vmatpush1.xpose.msra.mxu0 0.0
    %378 = vmatprep.subr.mxu0 0.0
    %379 = vmatpush1.xpose.msra.mxu0 0.0
    %380 = vmatprep.subr.mxu0 0.0
    %381 = vmatpush1.xpose.msra.mxu0 0.0
    %382 = vmatprep.subr.mxu0 0.0
    %383 = vmatpush1.xpose.msra.mxu0 0.0
    %384 = vmatprep.subr.mxu0 0.0
    %385 = vmatpush1.xpose.msra.mxu0 0.0
    %386 = vmatprep.subr.mxu0 0.0
    %387 = vmatpush1.xpose.msra.mxu0 0.0
    %388 = vmatprep.subr.mxu0 0.0
    %389 = vmatpush1.xpose.msra.mxu0 0.0
    %390 = vmatprep.subr.mxu0 0.0
    %391 = vmatpush1.xpose.msra.mxu0 0.0
    %392 = vmatprep.subr.mxu0 0.0
    %393 = vmatpush1.xpose.msra.mxu0 0.0
    %394 = vmatprep.subr.mxu0 0.0
    %395 = vmatpush1.xpose.msra.mxu0 0.0
    %396 = vmatprep.subr.mxu0 0.0
    %397 = vmatpush1.xpose.msra.mxu0 0.0
    %398 = vmatprep.subr.mxu0 0.0
    %399 = vmatpush1.xpose.msra.mxu0 0.0
    %400 = vmatprep.subr.mxu0 0.0
    %401 = vmatpush1.xpose.msra.mxu0 0.0
    %402 = vmatprep.mubr.f32.mxu0 0.0
    %403 = vmatmul.mubr.f32.gmra.mrb[0].mxu0 %v330
    %v404 = vpop.f32.mrb[0].mxu0
    %v405 = vadd.f32 %v327, %v404
    %v406 = vpop.f32.mrb[0].mxu0
    %407 = vdwg.mxu0
    %v409 = vrot.slane %v405, 1
    %v411 = vmin.f32 %v405, %v409
    %vm412 = vcmask 122880
    %413 = vst.msk [vmem:[#allocation2] sm:$0x1] %vm412, %v411
    // Predicated region
    $region38: #{gp_critic_forward.1} parent=1 // pred_check
      _
    $region39: #{gp_critic_forward.1} parent=1 // pred_check_branch
      %415 = sbr.rel (0) target = $region41
    $region40: #{gp_critic_forward.1} parent=1 // pred_region
      %s417 = ssub.s32 16, 16
      %418 = vsyncadd [#allocation3], %s417
      %s420 = sshll.u32 [#allocation2], 4
      %s421 = int_to_ptr.vmem [resolvable:$true] %s420
      %423 = dma.vmem_to_hbm [thread:$0]  %s421, 16, %s9, [#allocation3]
    $region41: #{gp_critic_forward.1} parent=1 // pred_fallthru
      _
    // Predicated region
    $region42: #{gp_critic_forward.1} parent=1 // pred_check
      _
    $region43: #{gp_critic_forward.1} parent=1 // pred_check_branch
      %425 = sbr.rel (0) target = $region45
    $region44: #{gp_critic_forward.1} parent=1 // pred_region
      %426 = dma.done [#allocation3], 16
    $region45: #{gp_critic_forward.1} parent=1 // pred_fallthru
      _
    %427 = vsyncpa [#allocation3], 1

</llo_original>
